<compile_context>
chip_gen: v7x
topology: tpu7x:2x2x1
jax: 0.10.0
libtpu: 0.0.40
codegen_flags: <defaults>
</compile_context>

<pallas_src>
import math
import functools

import jax
import jax.numpy as jnp
from jax import lax
from jax.experimental import pallas as pl
from jax.experimental.pallas import tpu as pltpu


# dot_general dimension numbers: contract last dim of both operands (x @ W.T, q @ k.T)
_DN_LAST = (((1,), (1,)), ((), ()))


def _vmem_limit_bytes(*nbytes):
    # double-buffered blocks + headroom, clamped to a range safe on v5e/v6e/v7x
    need = 2 * int(sum(nbytes)) + (4 << 20)
    return int(min(max(need, 16 << 20), 48 << 20))


# ----------------------------------------------------------------------------
# Kernel A: q/k projections, packed into one lane-dense (B*N, 2L) output slab
# ----------------------------------------------------------------------------
def _qk_proj_kernel(q_in_ref, k_in_ref, wq_ref, wk_ref, qk_ref):
    L = wq_ref.shape[0]
    q = lax.dot_general(q_in_ref[...], wq_ref[...], _DN_LAST,
                        preferred_element_type=jnp.float32)      # (B*N, L)
    k = lax.dot_general(k_in_ref[...], wk_ref[...], _DN_LAST,
                        preferred_element_type=jnp.float32)      # (B*N, L)
    qk_ref[:, :L] = q.astype(qk_ref.dtype)
    qk_ref[:, L:] = k.astype(qk_ref.dtype)


# ----------------------------------------------------------------------------
# Kernel B: per-(batch, head) attention. Computes this head's q/k slice from the
# per-head weight block (no transposes, no dynamic lane slicing), softmax with
# EUP reciprocal, and writes residual + attn@v for this head's feature slice.
# ----------------------------------------------------------------------------
def _head_attention_kernel(q_in_ref, k_in_ref, xh_ref, wq_ref, wk_ref,
                           attn_ref, av_ref, *, scale):
    qh = lax.dot_general(q_in_ref[...], wq_ref[...], _DN_LAST,
                         preferred_element_type=jnp.float32)     # (N, dl)
    kh = lax.dot_general(k_in_ref[...], wk_ref[...], _DN_LAST,
                         preferred_element_type=jnp.float32)     # (N, dl)
    s = lax.dot_general(qh, kh, _DN_LAST,
                        preferred_element_type=jnp.float32) * scale   # (N, N)
    s = s - jnp.max(s, axis=-1, keepdims=True)                   # numerical safety
    e = jnp.exp(s)
    denom = jnp.sum(e, axis=-1, keepdims=True)
    a = e * pl.reciprocal(denom, approx=True)                    # EUP, not VALU divide
    attn_ref[...] = a.astype(attn_ref.dtype)                     # optionally bf16
    vh = xh_ref[...]                                             # (N, dv) = value slice
    av_ref[...] = (vh + jnp.dot(a, vh, preferred_element_type=jnp.float32)
                   ).astype(av_ref.dtype)                        # residual included


# ----------------------------------------------------------------------------
# Kernel C: BatchNorm1d (training-mode stats, channels = token dim N) fused with
# the output projection as a single flattened (B*N, C) @ (C, C) matmul.
# ----------------------------------------------------------------------------
def _bn_proj_kernel(x_ref, gamma_ref, beta_ref, wp_ref, bp_ref, out_ref, *, eps):
    x = x_ref[...]                                               # (B, N, C) f32
    B, N, C = x.shape
    inv_cnt = 1.0 / float(B * C)
    s = jnp.sum(jnp.sum(x, axis=2, keepdims=True), axis=0, keepdims=True)   # (1,N,1)
    mean = s * inv_cnt
    d = x - mean
    var = jnp.sum(jnp.sum(d * d, axis=2, keepdims=True), axis=0,
                  keepdims=True) * inv_cnt                       # biased variance
    xn = d * (lax.rsqrt(var + eps) * gamma_ref[...]) + beta_ref[...]
    y = lax.dot_general(xn.reshape(B * N, C), wp_ref[...], _DN_LAST,
                        preferred_element_type=jnp.float32) + bp_ref[...]
    out_ref[...] = y.astype(out_ref.dtype)                       # (B*N, C)


# ----------------------------------------------------------------------------
# Wrapper
# ----------------------------------------------------------------------------
def attention_forward(q_in, k_in, x, wq, wk, wp, bp, gamma, beta,
                      *, num_heads, eps=1e-5, attn_dtype=jnp.float32):
    B, N, C = x.shape
    L = q_in.shape[-1]
    dl = L // num_heads
    dv = C // num_heads
    scale = (C // num_heads) ** -0.5

    # ---- Kernel A: packed q/k projection over flattened rows ----------------
    qk = pl.pallas_call(
        _qk_proj_kernel,
        out_shape=jax.ShapeDtypeStruct((B * N, 2 * L), jnp.float32),
        compiler_params=pltpu.CompilerParams(
            vmem_limit_bytes=_vmem_limit_bytes(
                2 * B * N * L * 4, 2 * L * L * 4, B * N * 2 * L * 4)),
    )(q_in.reshape(B * N, L), k_in.reshape(B * N, L), wq, wk)
    q = qk[:, :L].reshape(B, N, L)
    k = qk[:, L:].reshape(B, N, L)

    # ---- Kernel B: per-(batch, head) attention -------------------------------
    # wrapper-side layout plumbing: values in head-major layout (B, H, N, dv)
    x_heads = x.reshape(B, N, num_heads, dv).transpose(0, 2, 1, 3)
    attn_itemsize = jnp.dtype(attn_dtype).itemsize
    blk_bytes = (2 * N * L * 4 + N * dv * 4 + 2 * dl * L * 4
                 + N * N * attn_itemsize + N * dv * 4)
    attn, av = pl.pallas_call(
        functools.partial(_head_attention_kernel, scale=scale),
        out_shape=(
            jax.ShapeDtypeStruct((B, num_heads, N, N), attn_dtype),
            jax.ShapeDtypeStruct((B, num_heads, N, dv), jnp.float32),
        ),
        grid=(B, num_heads),
        in_specs=[
            pl.BlockSpec((None, N, L), lambda b, h: (b, 0, 0)),          # q_in (resident)
            pl.BlockSpec((None, N, L), lambda b, h: (b, 0, 0)),          # k_in (resident)
            pl.BlockSpec((None, None, N, dv), lambda b, h: (b, h, 0, 0)),  # value slice
            pl.BlockSpec((dl, L), lambda b, h: (h, 0)),                  # Wq head rows
            pl.BlockSpec((dl, L), lambda b, h: (h, 0)),                  # Wk head rows
        ],
        out_specs=[
            pl.BlockSpec((None, None, N, N), lambda b, h: (b, h, 0, 0)),   # attn
            pl.BlockSpec((None, None, N, dv), lambda b, h: (b, h, 0, 0)),  # x_slice + a@v
        ],
        compiler_params=pltpu.CompilerParams(
            dimension_semantics=("parallel", "parallel"),
            vmem_limit_bytes=_vmem_limit_bytes(blk_bytes)),
    )(q_in, k_in, x_heads, wq, wk)

    # re-assemble residual-added attention output to (B, N, C) (layout plumbing)
    xres = av.transpose(0, 2, 1, 3).reshape(B, N, C)

    # ---- Kernel C: BN (batch stats) + output projection ----------------------
    y_flat = pl.pallas_call(
        functools.partial(_bn_proj_kernel, eps=eps),
        out_shape=jax.ShapeDtypeStruct((B * N, C), jnp.float32),
        compiler_params=pltpu.CompilerParams(
            vmem_limit_bytes=_vmem_limit_bytes(
                2 * B * N * C * 4, 2 * N * 4, C * C * 4, C * 4)),
    )(xres, gamma, beta, wp, bp)
    x_out = y_flat.reshape(B, N, C)

    # TODO(synk): dropout (p=0.0) and BatchNorm running-stat updates are identity /
    # stateful bookkeeping and are intentionally not modeled.
    return q, k, x_out, attn


# ----------------------------------------------------------------------------
# Pure-JAX reference (mirrors the PyTorch forward in training mode)
# ----------------------------------------------------------------------------
def reference(q_in, k_in, x, wq, wk, wp, bp, gamma, beta, *, num_heads, eps=1e-5):
    B, N, C = x.shape
    L = q_in.shape[-1]
    scale = (C // num_heads) ** -0.5
    q = q_in @ wq.T
    k = k_in @ wk.T
    dl = L // num_heads
    dv = C // num_heads
    qh = q.reshape(B, N, num_heads, dl).transpose(0, 2, 1, 3)
    kh = k.reshape(B, N, num_heads, dl).transpose(0, 2, 1, 3)
    attn = jax.nn.softmax(qh @ jnp.swapaxes(kh, -2, -1) * scale, axis=-1)
    v = x.reshape(B, N, num_heads, dv).transpose(0, 2, 1, 3)
    xo = x + (attn @ v).transpose(0, 2, 1, 3).reshape(B, N, C)
    mean = xo.mean(axis=(0, 2), keepdims=True)
    var = ((xo - mean) ** 2).mean(axis=(0, 2), keepdims=True)
    xn = (xo - mean) / jnp.sqrt(var + eps) * gamma + beta
    y = xn @ wp.T + bp.reshape(C)
    return q, k, y, attn


if __name__ == "__main__":
    # Small shapes consistent with the forward:
    #   B=2 batches, N=16 tokens, dim=C=32, linear_dim=L=32, num_heads=4.
    # (The original hardcodes BatchNorm1d(540), i.e. N=540; BN channels are
    #  parametrized by N here so a small N works with identical semantics.)
    B, N, C, L, H = 2, 16, 32, 32, 4

    key = jax.random.PRNGKey(0)
    kq, kk, kp, k1, k2, k3 = jax.random.split(key, 6)

    # Deterministic "kaiming_normal_"-style init: std = sqrt(2 / fan_in), zero bias.
    wq = jax.random.normal(kq, (L, L), jnp.float32) * math.sqrt(2.0 / L)
    wk = jax.random.normal(kk, (L, L), jnp.float32) * math.sqrt(2.0 / L)
    wp = jax.random.normal(kp, (C, C), jnp.float32) * math.sqrt(2.0 / C)
    bp = jnp.zeros((1, C), jnp.float32)
    gamma = jnp.ones((1, N, 1), jnp.float32)   # BN affine weight (init 1)
    beta = jnp.zeros((1, N, 1), jnp.float32)   # BN affine bias   (init 0)

    q_in = jax.random.normal(k1, (B, N, L), jnp.float32)
    k_in = jax.random.normal(k2, (B, N, L), jnp.float32)
    x = jax.random.normal(k3, (B, N, C), jnp.float32)

    q_r, k_r, x_r, attn_r = reference(
        q_in, k_in, x, wq, wk, wp, bp, gamma, beta, num_heads=H)

    # --- default path (f32 attn, matches module dtypes) ----------------------
    q, k, x_out, attn = attention_forward(
        q_in, k_in, x, wq, wk, wp, bp, gamma, beta, num_heads=H)
    jax.block_until_ready((q, k, x_out, attn))

    assert jnp.allclose(q, q_r, atol=1e-4, rtol=1e-4)
    assert jnp.allclose(k, k_r, atol=1e-4, rtol=1e-4)
    # softmax normalization uses the EUP approximate reciprocal -> slightly looser tol
    assert jnp.allclose(attn, attn_r, atol=5e-3, rtol=5e-3)
    assert jnp.allclose(x_out, x_r, atol=5e-3, rtol=5e-3)

    # --- bf16 attn writeback (the dominant HBM traffic at production shapes) --
    _, _, x_out_b, attn_b = attention_forward(
        q_in, k_in, x, wq, wk, wp, bp, gamma, beta, num_heads=H,
        attn_dtype=jnp.bfloat16)
    jax.block_until_ready((x_out_b, attn_b))
    assert attn_b.dtype == jnp.bfloat16
    assert jnp.allclose(attn_b.astype(jnp.float32), attn_r, atol=2e-2, rtol=2e-2)
    assert jnp.allclose(x_out_b, x_r, atol=5e-3, rtol=5e-3)

    print("KERNEL_OK")
</pallas_src>

<mosaic_0001>
module attributes {stable_mosaic.version = 11 : i64} {
  func.func @_qk_proj_kernel(%arg0: memref<32x32xf32, #tpu.memory_space<vmem>>, %arg1: memref<32x32xf32, #tpu.memory_space<vmem>>, %arg2: memref<32x32xf32, #tpu.memory_space<vmem>>, %arg3: memref<32x32xf32, #tpu.memory_space<vmem>>, %arg4: memref<32x64xf32, #tpu.memory_space<vmem>>) attributes {dimension_semantics = [], scalar_prefetch = 0 : i64, scratch_operands = 0 : i64, tpu.core_type = #tpu.core_type<tc>} {
    %c0 = arith.constant 0 : index
    %c0_0 = arith.constant 0 : index
    %0 = vector.load %arg0[%c0, %c0_0] : memref<32x32xf32, #tpu.memory_space<vmem>>, vector<32x32xf32>
    %c0_1 = arith.constant 0 : index
    %c0_2 = arith.constant 0 : index
    %1 = vector.load %arg2[%c0_1, %c0_2] : memref<32x32xf32, #tpu.memory_space<vmem>>, vector<32x32xf32>
    %cst = arith.constant dense<0.000000e+00> : vector<32x32xf32>
    %2 = tpu.matmul %0, %1, %cst {dimension_numbers = #tpu.dot_dimension_numbers<[1], [1], [0], [0], [0, 0, 1, 0], [], []>} : vector<32x32xf32>, vector<32x32xf32>, vector<32x32xf32> -> vector<32x32xf32>
    %c0_3 = arith.constant 0 : index
    %c0_4 = arith.constant 0 : index
    %3 = vector.load %arg1[%c0_3, %c0_4] : memref<32x32xf32, #tpu.memory_space<vmem>>, vector<32x32xf32>
    %c0_5 = arith.constant 0 : index
    %c0_6 = arith.constant 0 : index
    %4 = vector.load %arg3[%c0_5, %c0_6] : memref<32x32xf32, #tpu.memory_space<vmem>>, vector<32x32xf32>
    %cst_7 = arith.constant dense<0.000000e+00> : vector<32x32xf32>
    %5 = tpu.matmul %3, %4, %cst_7 {dimension_numbers = #tpu.dot_dimension_numbers<[1], [1], [0], [0], [0, 0, 1, 0], [], []>} : vector<32x32xf32>, vector<32x32xf32>, vector<32x32xf32> -> vector<32x32xf32>
    %c0_8 = arith.constant 0 : index
    %c0_9 = arith.constant 0 : index
    %6 = vector.load %arg4[%c0_8, %c0_9] : memref<32x64xf32, #tpu.memory_space<vmem>>, vector<32x32xf32>
    tpu.vector_store %arg4[%c0_8, %c0_9], %2 {strides = array<i32>} : memref<32x64xf32, #tpu.memory_space<vmem>>, vector<32x32xf32>,
    %c0_10 = arith.constant 0 : index
    %c32 = arith.constant 32 : index
    %7 = vector.load %arg4[%c0_10, %c32] : memref<32x64xf32, #tpu.memory_space<vmem>>, vector<32x32xf32>
    tpu.vector_store %arg4[%c0_10, %c32], %5 {strides = array<i32>} : memref<32x64xf32, #tpu.memory_space<vmem>>, vector<32x32xf32>,
    return
  }
}

</mosaic_0001>

<llo_original>
// kernel: tpu_custom_call.1
$region0: #{tpu_custom_call.1}
  #allocation0 [shape = 'u32[]', space=smem, size = 0x4, offset = 0x4, fixed_abs, tag = 'smem constant byte address 0x4 - core index']
  #allocation1 [shape = 'u32[144,128]{1,0:T(1,128)}', space=vmem, size = 0x12000, scoped, tag = 'internal scratch']
  %s0 = inlined_call_operand.hbm [shape: f32[32,32], index: 0, kind: input, shape index: {}]
  %s1 = inlined_call_operand.hbm [shape: f32[32,32], index: 1, kind: input, shape index: {}]
  %s2 = inlined_call_operand.hbm [shape: f32[32,32], index: 2, kind: input, shape index: {}]
  %s3 = inlined_call_operand.hbm [shape: f32[32,32], index: 3, kind: input, shape index: {}]
  %s4 = inlined_call_operand.hbm [shape: f32[32,64], index: 4, kind: output, shape index: {}]
  %s5 = sld [smem:[#allocation0]]
  $region42: #{tpu_custom_call.1} parent=0
    _
  %s7 = ssub.s32 1, %s5
  %s8 = scalar_select 0, %s7, %s5
  $region1: #{tpu_custom_call.1} parent=0
    #allocation2 [shape = 'u8[16384]{0}', space=vmem, size = 0x4000, scoped, tag = 'input window, operand 0, single buffered']
    #allocation3 [shape = 's32[1]{0}', space=sflag, size = 0x4, scoped, tag = 'scoped memory for tpu_custom_call.1']
    #allocation4 [shape = 's32[1]{0}', space=sflag, size = 0x4, scoped, tag = 'scoped memory for tpu_custom_call.1']
    #allocation5 [shape = 'u8[16384]{0}', space=vmem, size = 0x4000, scoped, tag = 'input window, operand 1, single buffered']
    #allocation6 [shape = 's32[1]{0}', space=sflag, size = 0x4, scoped, tag = 'scoped memory for tpu_custom_call.1']
    #allocation7 [shape = 'u8[16384]{0}', space=vmem, size = 0x4000, scoped, tag = 'input window, operand 2, single buffered']
    #allocation8 [shape = 'u8[16384]{0}', space=vmem, size = 0x4000, scoped, tag = 'input window, operand 3, single buffered']
    #allocation9 [shape = 's32[1]{0}', space=sflag, size = 0x4, scoped, tag = 'scoped memory for tpu_custom_call.1']
    #allocation10 [shape = 'u8[16384]{0}', space=vmem, size = 0x4000, scoped, tag = 'output window, operand 0, single buffered']
    %9 = vsyncpa [#allocation3], 0
    %10 = vsyncpa [#allocation6], 0
    %11 = vsyncpa [#allocation9], 0
    %12 = vsyncpa [#allocation4], 0
    // Predicated region
    $region2: #{tpu_custom_call.1} parent=1 // pred_check
      _
    $region3: #{tpu_custom_call.1} parent=1 // pred_check_branch
      %14 = sbr.rel (0) target = $region5
    $region4: #{tpu_custom_call.1} parent=1 // pred_region
      %s16 = ssub.s32 512, 512
      %17 = vsyncadd [#allocation3], %s16
      %s18 = sshll.u32 [#allocation2], 4
      %s19 = int_to_ptr.vmem [resolvable:$true] %s18
      %24 = dma.hbm_to_vmem [thread:$0]  %s0, 512, %s19, [#allocation3], 128, 128, 8
    $region5: #{tpu_custom_call.1} parent=1 // pred_fallthru
      _
    // Predicated region
    $region6: #{tpu_custom_call.1} parent=1 // pred_check
      _
    $region7: #{tpu_custom_call.1} parent=1 // pred_check_branch
      %26 = sbr.rel (0) target = $region9
    $region8: #{tpu_custom_call.1} parent=1 // pred_region
      %s28 = ssub.s32 512, 512
      %29 = vsyncadd [#allocation6], %s28
      %s30 = sshll.u32 [#allocation5], 4
      %s31 = int_to_ptr.vmem [resolvable:$true] %s30
      %36 = dma.hbm_to_vmem [thread:$0]  %s1, 512, %s31, [#allocation6], 128, 128, 8
    $region9: #{tpu_custom_call.1} parent=1 // pred_fallthru
      _
    // Predicated region
    $region10: #{tpu_custom_call.1} parent=1 // pred_check
      _
    $region11: #{tpu_custom_call.1} parent=1 // pred_check_branch
      %38 = sbr.rel (0) target = $region13
    $region12: #{tpu_custom_call.1} parent=1 // pred_region
      %s40 = ssub.s32 512, 512
      %41 = vsyncadd [#allocation6], %s40
      %s42 = sshll.u32 [#allocation7], 4
      %s43 = int_to_ptr.vmem [resolvable:$true] %s42
      %48 = dma.hbm_to_vmem [thread:$0]  %s2, 512, %s43, [#allocation6], 128, 128, 8
    $region13: #{tpu_custom_call.1} parent=1 // pred_fallthru
      _
    // Predicated region
    $region14: #{tpu_custom_call.1} parent=1 // pred_check
      _
    $region15: #{tpu_custom_call.1} parent=1 // pred_check_branch
      %50 = sbr.rel (0) target = $region17
    $region16: #{tpu_custom_call.1} parent=1 // pred_region
      %s52 = ssub.s32 512, 512
      %53 = vsyncadd [#allocation9], %s52
      %s54 = sshll.u32 [#allocation8], 4
      %s55 = int_to_ptr.vmem [resolvable:$true] %s54
      %60 = dma.hbm_to_vmem [thread:$0]  %s3, 512, %s55, [#allocation9], 128, 128, 8
    $region17: #{tpu_custom_call.1} parent=1 // pred_fallthru
      _
    // Predicated region
    $region18: #{tpu_custom_call.1} parent=1 // pred_check
      _
    $region19: #{tpu_custom_call.1} parent=1 // pred_check_branch
      %62 = sbr.rel (0) target = $region21
    $region20: #{tpu_custom_call.1} parent=1 // pred_region
      %63 = dma.done [#allocation3], 512
    $region21: #{tpu_custom_call.1} parent=1 // pred_fallthru
      _
    // Predicated region
    $region22: #{tpu_custom_call.1} parent=1 // pred_check
      _
    $region23: #{tpu_custom_call.1} parent=1 // pred_check_branch
      %65 = sbr.rel (0) target = $region25
    $region24: #{tpu_custom_call.1} parent=1 // pred_region
      %66 = dma.done [#allocation6], 512
    $region25: #{tpu_custom_call.1} parent=1 // pred_fallthru
      _
    // Predicated region
    $region26: #{tpu_custom_call.1} parent=1 // pred_check
      _
    $region27: #{tpu_custom_call.1} parent=1 // pred_check_branch
      %68 = sbr.rel (0) target = $region29
    $region28: #{tpu_custom_call.1} parent=1 // pred_region
      %69 = dma.done [#allocation6], 512
    $region29: #{tpu_custom_call.1} parent=1 // pred_fallthru
      _
    // Predicated region
    $region30: #{tpu_custom_call.1} parent=1 // pred_check
      _
    $region31: #{tpu_custom_call.1} parent=1 // pred_check_branch
      %71 = sbr.rel (0) target = $region33
    $region32: #{tpu_custom_call.1} parent=1 // pred_region
      %72 = dma.done [#allocation9], 512
    $region33: #{tpu_custom_call.1} parent=1 // pred_fallthru
      _
    %v73 = vld [vmem:[#allocation2] sm:$0xff]
    %v74 = vld [vmem:[#allocation2 + $0x8] sm:$0xff]
    %v75 = vld [vmem:[#allocation2 + $0x10] sm:$0xff]
    %v76 = vld [vmem:[#allocation2 + $0x18] sm:$0xff]
    %v77 = vld [vmem:[#allocation7] sm:$0xff]
    %v78 = vld [vmem:[#allocation7 + $0x8] sm:$0xff]
    %v79 = vld [vmem:[#allocation7 + $0x10] sm:$0xff]
    %v80 = vld [vmem:[#allocation7 + $0x18] sm:$0xff]
    %vm81 = vcmask 261120
    %v83 = vsel %vm81, %v73, 0
    %v86 = vsel %vm81, %v74, 0
    %v89 = vsel %vm81, %v75, 0
    %v92 = vsel %vm81, %v76, 0
    %v95 = vsel %vm81, %v77, 0
    %v98 = vsel %vm81, %v78, 0
    %v101 = vsel %vm81, %v79, 0
    %v104 = vsel %vm81, %v80, 0
    %106 = vmatprep.subr.mxu0 0.0
    %107 = vmatpush1.xpose.msra.mxu0 %v95
    %108 = vmatprep.subr.mxu0 0.0
    %109 = vmatpush1.xpose.msra.mxu0 %v98
    %110 = vmatprep.subr.mxu0 0.0
    %111 = vmatpush1.xpose.msra.mxu0 %v101
    %112 = vmatprep.subr.mxu0 0.0
    %113 = vmatpush1.xpose.msra.mxu0 %v104
    %114 = vmatprep.subr.mxu0 0.0
    %115 = vmatpush1.xpose.msra.mxu0 0.0
    %116 = vmatprep.subr.mxu0 0.0
    %117 = vmatpush1.xpose.msra.mxu0 0.0
    %118 = vmatprep.subr.mxu0 0.0
    %119 = vmatpush1.xpose.msra.mxu0 0.0
    %120 = vmatprep.subr.mxu0 0.0
    %121 = vmatpush1.xpose.msra.mxu0 0.0
    %122 = vmatprep.subr.mxu0 0.0
    %123 = vmatpush1.xpose.msra.mxu0 0.0
    %124 = vmatprep.subr.mxu0 0.0
    %125 = vmatpush1.xpose.msra.mxu0 0.0
    %126 = vmatprep.subr.mxu0 0.0
    %127 = vmatpush1.xpose.msra.mxu0 0.0
    %128 = vmatprep.subr.mxu0 0.0
    %129 = vmatpush1.xpose.msra.mxu0 0.0
    %130 = vmatprep.subr.mxu0 0.0
    %131 = vmatpush1.xpose.msra.mxu0 0.0
    %132 = vmatprep.subr.mxu0 0.0
    %133 = vmatpush1.xpose.msra.mxu0 0.0
    %134 = vmatprep.subr.mxu0 0.0
    %135 = vmatpush1.xpose.msra.mxu0 0.0
    %136 = vmatprep.subr.mxu0 0.0
    %137 = vmatpush1.xpose.msra.mxu0 0.0
    %138 = vmatprep.subr.mxu0 0.0
    %139 = vmatpush1.xpose.msra.mxu0 0.0
    %140 = vmatprep.subr.mxu0 0.0
    %141 = vmatpush1.xpose.msra.mxu0 0.0
    %142 = vmatprep.subr.mxu0 0.0
    %143 = vmatpush1.xpose.msra.mxu0 0.0
    %144 = vmatprep.subr.mxu0 0.0
    %145 = vmatpush1.xpose.msra.mxu0 0.0
    %146 = vmatprep.subr.mxu0 0.0
    %147 = vmatpush1.xpose.msra.mxu0 0.0
    %148 = vmatprep.subr.mxu0 0.0
    %149 = vmatpush1.xpose.msra.mxu0 0.0
    %150 = vmatprep.subr.mxu0 0.0
    %151 = vmatpush1.xpose.msra.mxu0 0.0
    %152 = vmatprep.subr.mxu0 0.0
    %153 = vmatpush1.xpose.msra.mxu0 0.0
    %154 = vmatprep.subr.mxu0 0.0
    %155 = vmatpush1.xpose.msra.mxu0 0.0
    %156 = vmatprep.subr.mxu0 0.0
    %157 = vmatpush1.xpose.msra.mxu0 0.0
    %158 = vmatprep.subr.mxu0 0.0
    %159 = vmatpush1.xpose.msra.mxu0 0.0
    %160 = vmatprep.subr.mxu0 0.0
    %161 = vmatpush1.xpose.msra.mxu0 0.0
    %162 = vmatprep.subr.mxu0 0.0
    %163 = vmatpush1.xpose.msra.mxu0 0.0
    %164 = vmatprep.subr.mxu0 0.0
    %165 = vmatpush1.xpose.msra.mxu0 0.0
    %166 = vmatprep.subr.mxu0 0.0
    %167 = vmatpush1.xpose.msra.mxu0 0.0
    %168 = vmatprep.subr.mxu0 0.0
    %169 = vmatpush1.xpose.msra.mxu0 0.0
    %170 = vmatprep.mubr.f32.mxu0 0.0
    %171 = vmatmul.mubr.f32.gmra.mrb[0].mxu0 %v83
    %v172 = vpop.f32.mrb[0].mxu0
    %v173 = vadd.f32 0.0, %v172
    %v174 = vpop.f32.mrb[0].mxu0
    %175 = vmatprep.mubr.f32.mxu0 0.0
    %176 = vmatmul.mubr.f32.gmra.mrb[0].mxu0 %v86
    %v177 = vpop.f32.mrb[0].mxu0
    %v178 = vadd.f32 0.0, %v177
    %v179 = vpop.f32.mrb[0].mxu0
    %180 = vmatprep.mubr.f32.mxu0 0.0
    %181 = vmatmul.mubr.f32.gmra.mrb[0].mxu0 %v89
    %v182 = vpop.f32.mrb[0].mxu0
    %v183 = vadd.f32 0.0, %v182
    %v184 = vpop.f32.mrb[0].mxu0
    %185 = vmatprep.mubr.f32.mxu0 0.0
    %186 = vmatmul.mubr.f32.gmra.mrb[0].mxu0 %v92
    %v187 = vpop.f32.mrb[0].mxu0
    %v188 = vadd.f32 0.0, %v187
    %v189 = vpop.f32.mrb[0].mxu0
    %190 = vdwg.mxu0
    %v191 = vld [vmem:[#allocation5] sm:$0xff]
    %v192 = vld [vmem:[#allocation5 + $0x8] sm:$0xff]
    %v193 = vld [vmem:[#allocation5 + $0x10] sm:$0xff]
    %v194 = vld [vmem:[#allocation5 + $0x18] sm:$0xff]
    %v195 = vld [vmem:[#allocation8] sm:$0xff]
    %v196 = vld [vmem:[#allocation8 + $0x8] sm:$0xff]
    %v197 = vld [vmem:[#allocation8 + $0x10] sm:$0xff]
    %v198 = vld [vmem:[#allocation8 + $0x18] sm:$0xff]
    %v200 = vsel %vm81, %v191, 0
    %v203 = vsel %vm81, %v192, 0
    %v206 = vsel %vm81, %v193, 0
    %v209 = vsel %vm81, %v194, 0
    %v212 = vsel %vm81, %v195, 0
    %v215 = vsel %vm81, %v196, 0
    %v218 = vsel %vm81, %v197, 0
    %v221 = vsel %vm81, %v198, 0
    %223 = vmatprep.subr.mxu0 0.0
    %224 = vmatpush1.xpose.msra.mxu0 %v212
    %225 = vmatprep.subr.mxu0 0.0
    %226 = vmatpush1.xpose.msra.mxu0 %v215
    %227 = vmatprep.subr.mxu0 0.0
    %228 = vmatpush1.xpose.msra.mxu0 %v218
    %229 = vmatprep.subr.mxu0 0.0
    %230 = vmatpush1.xpose.msra.mxu0 %v221
    %231 = vmatprep.subr.mxu0 0.0
    %232 = vmatpush1.xpose.msra.mxu0 0.0
    %233 = vmatprep.subr.mxu0 0.0
    %234 = vmatpush1.xpose.msra.mxu0 0.0
    %235 = vmatprep.subr.mxu0 0.0
    %236 = vmatpush1.xpose.msra.mxu0 0.0
    %237 = vmatprep.subr.mxu0 0.0
    %238 = vmatpush1.xpose.msra.mxu0 0.0
    %239 = vmatprep.subr.mxu0 0.0
    %240 = vmatpush1.xpose.msra.mxu0 0.0
    %241 = vmatprep.subr.mxu0 0.0
    %242 = vmatpush1.xpose.msra.mxu0 0.0
    %243 = vmatprep.subr.mxu0 0.0
    %244 = vmatpush1.xpose.msra.mxu0 0.0
    %245 = vmatprep.subr.mxu0 0.0
    %246 = vmatpush1.xpose.msra.mxu0 0.0
    %247 = vmatprep.subr.mxu0 0.0
    %248 = vmatpush1.xpose.msra.mxu0 0.0
    %249 = vmatprep.subr.mxu0 0.0
    %250 = vmatpush1.xpose.msra.mxu0 0.0
    %251 = vmatprep.subr.mxu0 0.0
    %252 = vmatpush1.xpose.msra.mxu0 0.0
    %253 = vmatprep.subr.mxu0 0.0
    %254 = vmatpush1.xpose.msra.mxu0 0.0
    %255 = vmatprep.subr.mxu0 0.0
    %256 = vmatpush1.xpose.msra.mxu0 0.0
    %257 = vmatprep.subr.mxu0 0.0
    %258 = vmatpush1.xpose.msra.mxu0 0.0
    %259 = vmatprep.subr.mxu0 0.0
    %260 = vmatpush1.xpose.msra.mxu0 0.0
    %261 = vmatprep.subr.mxu0 0.0
    %262 = vmatpush1.xpose.msra.mxu0 0.0
    %263 = vmatprep.subr.mxu0 0.0
    %264 = vmatpush1.xpose.msra.mxu0 0.0
    %265 = vmatprep.subr.mxu0 0.0
    %266 = vmatpush1.xpose.msra.mxu0 0.0
    %267 = vmatprep.subr.mxu0 0.0
    %268 = vmatpush1.xpose.msra.mxu0 0.0
    %269 = vmatprep.subr.mxu0 0.0
    %270 = vmatpush1.xpose.msra.mxu0 0.0
    %271 = vmatprep.subr.mxu0 0.0
    %272 = vmatpush1.xpose.msra.mxu0 0.0
    %273 = vmatprep.subr.mxu0 0.0
    %274 = vmatpush1.xpose.msra.mxu0 0.0
    %275 = vmatprep.subr.mxu0 0.0
    %276 = vmatpush1.xpose.msra.mxu0 0.0
    %277 = vmatprep.subr.mxu0 0.0
    %278 = vmatpush1.xpose.msra.mxu0 0.0
    %279 = vmatprep.subr.mxu0 0.0
    %280 = vmatpush1.xpose.msra.mxu0 0.0
    %281 = vmatprep.subr.mxu0 0.0
    %282 = vmatpush1.xpose.msra.mxu0 0.0
    %283 = vmatprep.subr.mxu0 0.0
    %284 = vmatpush1.xpose.msra.mxu0 0.0
    %285 = vmatprep.subr.mxu0 0.0
    %286 = vmatpush1.xpose.msra.mxu0 0.0
    %287 = vmatprep.mubr.f32.mxu0 0.0
    %288 = vmatmul.mubr.f32.gmra.mrb[0].mxu0 %v200
    %v289 = vpop.f32.mrb[0].mxu0
    %v290 = vadd.f32 0.0, %v289
    %v291 = vpop.f32.mrb[0].mxu0
    %292 = vmatprep.mubr.f32.mxu0 0.0
    %293 = vmatmul.mubr.f32.gmra.mrb[0].mxu0 %v203
    %v294 = vpop.f32.mrb[0].mxu0
    %v295 = vadd.f32 0.0, %v294
    %v296 = vpop.f32.mrb[0].mxu0
    %297 = vmatprep.mubr.f32.mxu0 0.0
    %298 = vmatmul.mubr.f32.gmra.mrb[0].mxu0 %v206
    %v299 = vpop.f32.mrb[0].mxu0
    %v300 = vadd.f32 0.0, %v299
    %v301 = vpop.f32.mrb[0].mxu0
    %302 = vmatprep.mubr.f32.mxu0 0.0
    %303 = vmatmul.mubr.f32.gmra.mrb[0].mxu0 %v209
    %v304 = vpop.f32.mrb[0].mxu0
    %v305 = vadd.f32 0.0, %v304
    %v306 = vpop.f32.mrb[0].mxu0
    %307 = vdwg.mxu0
    %308 = vst.msk [vmem:[#allocation10] sm:$0xff] %vm81, %v173
    %309 = vst.msk [vmem:[#allocation10 + $0x8] sm:$0xff] %vm81, %v178
    %310 = vst.msk [vmem:[#allocation10 + $0x10] sm:$0xff] %vm81, %v183
    %311 = vst.msk [vmem:[#allocation10 + $0x18] sm:$0xff] %vm81, %v188
    %316 = vrot.lane.b32.xlu0 %v290, 32
    %v317 = vpop.permute.xlu0 %316
    %318 = vrot.lane.b32.xlu0 %v295, 32
    %v319 = vpop.permute.xlu0 %318
    %320 = vrot.lane.b32.xlu0 %v300, 32
    %v321 = vpop.permute.xlu0 %320
    %322 = vrot.lane.b32.xlu0 %v305, 32
    %v323 = vpop.permute.xlu0 %322
    %vm328 = vcmask 523520
    %329 = vst.msk [vmem:[#allocation10] sm:$0xff] %vm328, %v317
    %330 = vst.msk [vmem:[#allocation10 + $0x8] sm:$0xff] %vm328, %v319
    %331 = vst.msk [vmem:[#allocation10 + $0x10] sm:$0xff] %vm328, %v321
    %332 = vst.msk [vmem:[#allocation10 + $0x18] sm:$0xff] %vm328, %v323
    // Predicated region
    $region34: #{tpu_custom_call.1} parent=1 // pred_check
      _
    $region35: #{tpu_custom_call.1} parent=1 // pred_check_branch
      %334 = sbr.rel (0) target = $region37
    $region36: #{tpu_custom_call.1} parent=1 // pred_region
      %s336 = ssub.s32 512, 512
      %337 = vsyncadd [#allocation4], %s336
      %s338 = sshll.u32 [#allocation10], 4
      %s339 = int_to_ptr.vmem [resolvable:$true] %s338
      %344 = dma.vmem_to_hbm [thread:$0]  %s339, 512, %s4, [#allocation4], 128, 128, 8
    $region37: #{tpu_custom_call.1} parent=1 // pred_fallthru
      _
    // Predicated region
    $region38: #{tpu_custom_call.1} parent=1 // pred_check
      _
    $region39: #{tpu_custom_call.1} parent=1 // pred_check_branch
      %346 = sbr.rel (0) target = $region41
    $region40: #{tpu_custom_call.1} parent=1 // pred_region
      %347 = dma.done [#allocation4], 512
    $region41: #{tpu_custom_call.1} parent=1 // pred_fallthru
      _
    %348 = vsyncpa [#allocation3], 1
    %349 = vsyncpa [#allocation6], 1
    %350 = vsyncpa [#allocation9], 1
    %351 = vsyncpa [#allocation4], 1

</llo_original>
